<compile_context>
chip_gen: v6e
topology: v6e:2x2x1
jax: 0.10.0
libtpu: 0.0.40
codegen_flags: <defaults>
</compile_context>

<pallas_src>
import functools

import jax
import jax.numpy as jnp
from jax.experimental import pallas as pl
from jax.experimental.pallas import tpu as pltpu


def _round_up(n, m):
    return (n + m - 1) // m * m


# -----------------------------------------------------------------------------
# Glue: bilinear point sampling (F.grid_sample, align_corners=False, zeros pad)
# Channel-LAST output: (B, P, C), so the MLP kernel input needs no transpose.
# -----------------------------------------------------------------------------
def point_sample_nlc(feat, coords):
    """feat: (B, C, H, W), coords: (B, P, 2) in [0, 1]^2.  Returns (B, P, C).

    Matches Detectron2 point_sample: grid_sample(feat, 2*coords - 1,
    mode='bilinear', align_corners=False, padding_mode='zeros'), but with the
    channel axis last.  coords[..., 0] indexes W (x), coords[..., 1] indexes H.
    """
    B, C, H, W = feat.shape
    x = coords[..., 0] * W - 0.5
    y = coords[..., 1] * H - 0.5
    x0 = jnp.floor(x)
    y0 = jnp.floor(y)
    x1 = x0 + 1.0
    y1 = y0 + 1.0
    wx1 = x - x0
    wx0 = 1.0 - wx1
    wy1 = y - y0
    wy0 = 1.0 - wy1

    flat = feat.reshape(B, C, H * W).transpose(0, 2, 1)        # (B, H*W, C)

    def gather(ix, iy):
        valid = (ix >= 0) & (ix <= W - 1) & (iy >= 0) & (iy <= H - 1)
        ixc = jnp.clip(ix, 0, W - 1).astype(jnp.int32)
        iyc = jnp.clip(iy, 0, H - 1).astype(jnp.int32)
        idx = iyc * W + ixc                                    # (B, P)
        g = jnp.take_along_axis(flat, idx[..., None], axis=1)  # (B, P, C)
        return g * valid[..., None].astype(feat.dtype)

    out = (gather(x0, y0) * (wx0 * wy0)[..., None]
           + gather(x1, y0) * (wx1 * wy0)[..., None]
           + gather(x0, y1) * (wx0 * wy1)[..., None]
           + gather(x1, y1) * (wx1 * wy1)[..., None])
    return out


# -----------------------------------------------------------------------------
# Glue: point selection for training (sampling_points, training=True branch)
# -----------------------------------------------------------------------------
def sampling_points_train(mask, N, k, beta, key):
    """mask: (B, C, H, W).  Returns points (B, N, 2) in [0, 1]^2."""
    B = mask.shape[0]
    # Only the top-2 channel values feed the uncertainty; top_k(2) over channels
    # is exactly sort(descending)[:2], and bilinear sampling is per-channel, so
    # sampling the top-2 maps equals sampling the fully sorted map's channels 0,1.
    top2 = jax.lax.top_k(jnp.moveaxis(mask, 1, -1), 2)[0]      # (B, H, W, 2)
    top2 = jnp.moveaxis(top2, -1, 1)                           # (B, 2, H, W)

    k_over, k_cov = jax.random.split(key)
    over_gen = jax.random.uniform(k_over, (B, k * N, 2), dtype=mask.dtype)
    og = point_sample_nlc(top2, over_gen)                      # (B, k*N, 2)
    uncertainty = -1.0 * (og[..., 0] - og[..., 1])             # (B, k*N)
    n_imp = int(beta * N)
    _, idx = jax.lax.top_k(uncertainty, n_imp)                 # (B, n_imp)
    importance = jnp.take_along_axis(over_gen, idx[..., None], axis=1)
    coverage = jax.random.uniform(k_cov, (B, N - n_imp, 2), dtype=mask.dtype)
    return jnp.concatenate([importance, coverage], axis=1)     # (B, N, 2)


# -----------------------------------------------------------------------------
# Pallas kernel: fused 4-layer 1x1-conv MLP over sampled points
#   bf16 MXU matmuls, f32 accumulation, f32 bias + ReLU, lane-dense f32 store.
# -----------------------------------------------------------------------------
def _mlp_kernel(x_ref, w1_ref, b1_ref, w2_ref, b2_ref, w3_ref, b3_ref,
                w4_ref, b4_ref, o_ref):
    x = x_ref[...]                                             # (TM, Cin_pad) bf16
    h = jnp.dot(x, w1_ref[...], preferred_element_type=jnp.float32) + b1_ref[...]
    h = jnp.maximum(h, 0.0).astype(jnp.bfloat16)
    h = jnp.dot(h, w2_ref[...], preferred_element_type=jnp.float32) + b2_ref[...]
    h = jnp.maximum(h, 0.0).astype(jnp.bfloat16)
    h = jnp.dot(h, w3_ref[...], preferred_element_type=jnp.float32) + b3_ref[...]
    h = jnp.maximum(h, 0.0).astype(jnp.bfloat16)
    o = jnp.dot(h, w4_ref[...], preferred_element_type=jnp.float32) + b4_ref[...]
    o_ref[...] = o.astype(o_ref.dtype)                         # (TM, 128) f32


def point_mlp(feat_bpc, params, num_classes):
    """feat_bpc: (B, P, Cin) f32.  Returns (B, P, num_classes) f32."""
    B, P, Cin = feat_bpc.shape
    w1, b1, w2, b2, w3, b3, w4, b4 = params
    Cin_pad = w1.shape[0]          # zero-row padded at init (multiple of 128)
    Cout_pad = w4.shape[1]         # zero-col padded at init (multiple of 128)
    h1, h2, h3 = w1.shape[1], w2.shape[1], w3.shape[1]

    # Point-dim tiling: big tiles when P is large, single 16-aligned tile else.
    if P >= 512:
        TM = 512
    else:
        TM = _round_up(P, 16)
    P_pad = _round_up(P, TM)

    feat = feat_bpc
    if Cin_pad != Cin or P_pad != P:
        feat = jnp.pad(feat, ((0, 0), (0, P_pad - P), (0, Cin_pad - Cin)))
    feat = feat.astype(jnp.bfloat16)

    grid = (B, P_pad // TM)

    def const_spec(shape):
        return pl.BlockSpec(shape, lambda b, p: (0,) * len(shape))

    flops = 2 * B * P_pad * (Cin_pad * h1 + h1 * h2 + h2 * h3 + h3 * Cout_pad)
    bytes_accessed = (B * P_pad * Cin_pad * 2                      # bf16 acts in
                      + B * P_pad * Cout_pad * 4                   # f32 out
                      + (Cin_pad * h1 + h1 * h2 + h2 * h3 + h3 * Cout_pad) * 2
                      + (h1 + h2 + h3 + Cout_pad) * 4)             # biases
    cost = pl.CostEstimate(flops=flops, transcendentals=0,
                           bytes_accessed=bytes_accessed)

    out = pl.pallas_call(
        _mlp_kernel,
        out_shape=jax.ShapeDtypeStruct((B, P_pad, Cout_pad), jnp.float32),
        grid=grid,
        in_specs=[
            pl.BlockSpec((None, TM, Cin_pad), lambda b, p: (b, p, 0)),
            const_spec(w1.shape), const_spec(b1.shape),
            const_spec(w2.shape), const_spec(b2.shape),
            const_spec(w3.shape), const_spec(b3.shape),
            const_spec(w4.shape), const_spec(b4.shape),
        ],
        out_specs=pl.BlockSpec((None, TM, Cout_pad), lambda b, p: (b, p, 0)),
        compiler_params=pltpu.CompilerParams(
            dimension_semantics=("parallel", "parallel"),
            vmem_limit_bytes=32 * 1024 * 1024),
        cost_estimate=cost,
    )(feat, w1, b1, w2, b2, w3, b3, w4, b4)

    return out[:, :P, :num_classes]


# -----------------------------------------------------------------------------
# Whole training forward (jitted); mirrors PointHead.forward (training branch)
# -----------------------------------------------------------------------------
def _point_head_forward(params, x, res2, out, key, *, k, beta, num_classes):
    N = x.shape[-1] // 16
    points = sampling_points_train(out, N * N, k, beta, key)   # (B, P, 2)
    coarse = point_sample_nlc(out, points)                     # (B, P, C_out)
    fine = point_sample_nlc(res2, points)                      # (B, P, C_res2)
    # channel order matches torch.cat([coarse, fine], dim=1)
    feature = jnp.concatenate([coarse, fine], axis=-1)         # (B, P, in_c)
    rend_bpc = point_mlp(feature, params, num_classes)         # (B, P, classes)
    rend = jnp.transpose(rend_bpc, (0, 2, 1))                  # (B, classes, P)
    return {"rend": rend, "points": points}


class PointHead:
    def __init__(self, in_c=275, num_classes=19, k=3, beta=0.75, hidden=256,
                 key=jax.random.PRNGKey(42)):
        self.k = k
        self.beta = beta
        self.in_c = in_c
        self.num_classes = num_classes
        cin_pad = _round_up(in_c, 128)
        cout_pad = _round_up(num_classes, 128)
        keys = jax.random.split(key, 8)
        dims = [(in_c, hidden), (hidden, hidden), (hidden, hidden),
                (hidden, num_classes)]
        pads = [(cin_pad, hidden), (hidden, hidden), (hidden, hidden),
                (hidden, cout_pad)]
        params = []
        for i, ((ci, co), (cip, cop)) in enumerate(zip(dims, pads)):
            # Conv1d weight (co, ci, 1) stored transposed as (ci, co) for
            # right-multiplication; zero-padded to aligned shapes; bf16 weights,
            # f32 biases (added on the f32 accumulator).
            w = 0.05 * jax.random.normal(keys[2 * i], (ci, co), jnp.float32)
            b = 0.05 * jax.random.normal(keys[2 * i + 1], (1, co), jnp.float32)
            w = jnp.pad(w, ((0, cip - ci), (0, cop - co))).astype(jnp.bfloat16)
            b = jnp.pad(b, ((0, 0), (0, cop - co)))
            params += [w, b]
        self.params = tuple(params)
        self._fwd = jax.jit(functools.partial(
            _point_head_forward, k=k, beta=beta, num_classes=num_classes))

    def __call__(self, x, res2, out, key):
        """Training forward.  x, res2, out are NCHW float32 arrays."""
        return self._fwd(self.params, x, res2, out, key)

    # TODO(synk): the @torch.no_grad inference() subdivision loop (iterative
    # upsample + scatter of the 8096 most-uncertain points) is not implemented;
    # only the training forward is reproduced here.


# -----------------------------------------------------------------------------
if __name__ == "__main__":
    key = jax.random.PRNGKey(0)
    kx, kr, ko, kp = jax.random.split(key, 4)

    B = 2
    num_classes = 4       # channels of the coarse prediction `out`
    c_res2 = 16           # channels of the fine feature map `res2`
    in_c = num_classes + c_res2

    x = jax.random.normal(kx, (B, 3, 64, 64), jnp.float32)            # input image
    res2 = jax.random.normal(kr, (B, c_res2, 16, 16), jnp.float32)    # stride-4 feats
    out = jax.random.normal(ko, (B, num_classes, 8, 8), jnp.float32)  # coarse pred

    head = PointHead(in_c=in_c, num_classes=num_classes, k=3, beta=0.75)
    result = head(x, res2, out, kp)

    rend = jax.block_until_ready(result["rend"])
    points = jax.block_until_ready(result["points"])

    P = (x.shape[-1] // 16) ** 2
    assert rend.shape == (B, num_classes, P), rend.shape
    assert points.shape == (B, P, 2), points.shape
    assert bool(jnp.all(jnp.isfinite(rend)))

    print("KERNEL_OK")
</pallas_src>

<mosaic_0001>
module attributes {stable_mosaic.version = 11 : i64} {
  func.func @_mlp_kernel(%arg0: i32, %arg1: i32, %arg2: memref<1x16x128xbf16, #tpu.memory_space<vmem>>, %arg3: memref<128x256xbf16, #tpu.memory_space<vmem>>, %arg4: memref<1x256xf32, #tpu.memory_space<vmem>>, %arg5: memref<256x256xbf16, #tpu.memory_space<vmem>>, %arg6: memref<1x256xf32, #tpu.memory_space<vmem>>, %arg7: memref<256x256xbf16, #tpu.memory_space<vmem>>, %arg8: memref<1x256xf32, #tpu.memory_space<vmem>>, %arg9: memref<256x128xbf16, #tpu.memory_space<vmem>>, %arg10: memref<1x128xf32, #tpu.memory_space<vmem>>, %arg11: memref<1x16x128xf32, #tpu.memory_space<vmem>>) attributes {dimension_semantics = [#tpu.dimension_semantics<parallel>, #tpu.dimension_semantics<parallel>], iteration_bounds = array<i64: 2, 1>, scalar_prefetch = 0 : i64, scratch_operands = 0 : i64, tpu.core_type = #tpu.core_type<tc>, window_params = [{transform_indices = @transform_0, window_bounds = array<i64: 1, 16, 128>}, {pipeline_mode = #tpu.pipeline_mode<synchronous>, transform_indices = @transform_1, window_bounds = array<i64: 128, 256>}, {pipeline_mode = #tpu.pipeline_mode<synchronous>, transform_indices = @transform_2, window_bounds = array<i64: 1, 256>}, {pipeline_mode = #tpu.pipeline_mode<synchronous>, transform_indices = @transform_3, window_bounds = array<i64: 256, 256>}, {pipeline_mode = #tpu.pipeline_mode<synchronous>, transform_indices = @transform_4, window_bounds = array<i64: 1, 256>}, {pipeline_mode = #tpu.pipeline_mode<synchronous>, transform_indices = @transform_5, window_bounds = array<i64: 256, 256>}, {pipeline_mode = #tpu.pipeline_mode<synchronous>, transform_indices = @transform_6, window_bounds = array<i64: 1, 256>}, {pipeline_mode = #tpu.pipeline_mode<synchronous>, transform_indices = @transform_7, window_bounds = array<i64: 256, 128>}, {pipeline_mode = #tpu.pipeline_mode<synchronous>, transform_indices = @transform_8, window_bounds = array<i64: 1, 128>}, {transform_indices = @transform_9, window_bounds = array<i64: 1, 16, 128>}]} {
    %c0 = arith.constant 0 : index
    %c0_0 = arith.constant 0 : index
    %c0_1 = arith.constant 0 : index
    %0 = vector.load %arg2[%c0, %c0_0, %c0_1] : memref<1x16x128xbf16, #tpu.memory_space<vmem>>, vector<1x16x128xbf16>
    %1 = vector.shape_cast %0 : vector<1x16x128xbf16> to vector<16x128xbf16>
    %c0_2 = arith.constant 0 : index
    %c0_3 = arith.constant 0 : index
    %2 = vector.load %arg3[%c0_2, %c0_3] : memref<128x256xbf16, #tpu.memory_space<vmem>>, vector<128x256xbf16>
    %cst = arith.constant dense<0.000000e+00> : vector<16x256xf32>
    %3 = tpu.matmul %1, %2, %cst {dimension_numbers = #tpu.dot_dimension_numbers<[1], [0], [0], [1], [0, 0, 1, 1], [], []>} : vector<16x128xbf16>, vector<128x256xbf16>, vector<16x256xf32> -> vector<16x256xf32>
    %c0_4 = arith.constant 0 : index
    %c0_5 = arith.constant 0 : index
    %4 = vector.load %arg4[%c0_4, %c0_5] : memref<1x256xf32, #tpu.memory_space<vmem>>, vector<1x256xf32>
    %5 = vector.broadcast %4 : vector<1x256xf32> to vector<16x256xf32>
    %6 = arith.addf %3, %5 : vector<16x256xf32>
    %cst_6 = arith.constant 0.000000e+00 : f32
    %7 = vector.broadcast %cst_6 : f32 to vector<16x256xf32>
    %8 = arith.maximumf %6, %7 : vector<16x256xf32>
    %9 = arith.truncf %8 : vector<16x256xf32> to vector<16x256xbf16>
    %c0_7 = arith.constant 0 : index
    %c0_8 = arith.constant 0 : index
    %10 = vector.load %arg5[%c0_7, %c0_8] : memref<256x256xbf16, #tpu.memory_space<vmem>>, vector<256x256xbf16>
    %cst_9 = arith.constant dense<0.000000e+00> : vector<16x256xf32>
    %11 = tpu.matmul %9, %10, %cst_9 {dimension_numbers = #tpu.dot_dimension_numbers<[1], [0], [0], [1], [0, 0, 1, 1], [], []>} : vector<16x256xbf16>, vector<256x256xbf16>, vector<16x256xf32> -> vector<16x256xf32>
    %c0_10 = arith.constant 0 : index
    %c0_11 = arith.constant 0 : index
    %12 = vector.load %arg6[%c0_10, %c0_11] : memref<1x256xf32, #tpu.memory_space<vmem>>, vector<1x256xf32>
    %13 = vector.broadcast %12 : vector<1x256xf32> to vector<16x256xf32>
    %14 = arith.addf %11, %13 : vector<16x256xf32>
    %cst_12 = arith.constant 0.000000e+00 : f32
    %15 = vector.broadcast %cst_12 : f32 to vector<16x256xf32>
    %16 = arith.maximumf %14, %15 : vector<16x256xf32>
    %17 = arith.truncf %16 : vector<16x256xf32> to vector<16x256xbf16>
    %c0_13 = arith.constant 0 : index
    %c0_14 = arith.constant 0 : index
    %18 = vector.load %arg7[%c0_13, %c0_14] : memref<256x256xbf16, #tpu.memory_space<vmem>>, vector<256x256xbf16>
    %cst_15 = arith.constant dense<0.000000e+00> : vector<16x256xf32>
    %19 = tpu.matmul %17, %18, %cst_15 {dimension_numbers = #tpu.dot_dimension_numbers<[1], [0], [0], [1], [0, 0, 1, 1], [], []>} : vector<16x256xbf16>, vector<256x256xbf16>, vector<16x256xf32> -> vector<16x256xf32>
    %c0_16 = arith.constant 0 : index
    %c0_17 = arith.constant 0 : index
    %20 = vector.load %arg8[%c0_16, %c0_17] : memref<1x256xf32, #tpu.memory_space<vmem>>, vector<1x256xf32>
    %21 = vector.broadcast %20 : vector<1x256xf32> to vector<16x256xf32>
    %22 = arith.addf %19, %21 : vector<16x256xf32>
    %cst_18 = arith.constant 0.000000e+00 : f32
    %23 = vector.broadcast %cst_18 : f32 to vector<16x256xf32>
    %24 = arith.maximumf %22, %23 : vector<16x256xf32>
    %25 = arith.truncf %24 : vector<16x256xf32> to vector<16x256xbf16>
    %c0_19 = arith.constant 0 : index
    %c0_20 = arith.constant 0 : index
    %26 = vector.load %arg9[%c0_19, %c0_20] : memref<256x128xbf16, #tpu.memory_space<vmem>>, vector<256x128xbf16>
    %cst_21 = arith.constant dense<0.000000e+00> : vector<16x128xf32>
    %27 = tpu.matmul %25, %26, %cst_21 {dimension_numbers = #tpu.dot_dimension_numbers<[1], [0], [0], [1], [0, 0, 1, 1], [], []>} : vector<16x256xbf16>, vector<256x128xbf16>, vector<16x128xf32> -> vector<16x128xf32>
    %c0_22 = arith.constant 0 : index
    %c0_23 = arith.constant 0 : index
    %28 = vector.load %arg10[%c0_22, %c0_23] : memref<1x128xf32, #tpu.memory_space<vmem>>, vector<1x128xf32>
    %29 = vector.broadcast %28 : vector<1x128xf32> to vector<16x128xf32>
    %30 = arith.addf %27, %29 : vector<16x128xf32>
    %c0_24 = arith.constant 0 : index
    %c0_25 = arith.constant 0 : index
    %c0_26 = arith.constant 0 : index
    %31 = vector.load %arg11[%c0_24, %c0_25, %c0_26] : memref<1x16x128xf32, #tpu.memory_space<vmem>>, vector<1x16x128xf32>
    %32 = vector.shape_cast %31 : vector<1x16x128xf32> to vector<16x128xf32>
    %33 = vector.shape_cast %30 : vector<16x128xf32> to vector<1x16x128xf32>
    tpu.vector_store %arg11[%c0_24, %c0_25, %c0_26], %33 {strides = array<i32>} : memref<1x16x128xf32, #tpu.memory_space<vmem>>, vector<1x16x128xf32>,
    return
  }
  func.func @transform_0(%arg0: i32, %arg1: i32) -> (i32, i32, i32) {
    %c0_i32 = arith.constant 0 : i32
    %c0_i32_0 = arith.constant 0 : i32
    return %arg0, %arg1, %c0_i32 : i32, i32, i32
  }
  func.func @transform_1(%arg0: i32, %arg1: i32) -> (i32, i32) {
    %c0_i32 = arith.constant 0 : i32
    %c0_i32_0 = arith.constant 0 : i32
    %c0_i32_1 = arith.constant 0 : i32
    return %c0_i32, %c0_i32_0 : i32, i32
  }
  func.func @transform_2(%arg0: i32, %arg1: i32) -> (i32, i32) {
    %c0_i32 = arith.constant 0 : i32
    %c0_i32_0 = arith.constant 0 : i32
    %c0_i32_1 = arith.constant 0 : i32
    return %c0_i32, %c0_i32_0 : i32, i32
  }
  func.func @transform_3(%arg0: i32, %arg1: i32) -> (i32, i32) {
    %c0_i32 = arith.constant 0 : i32
    %c0_i32_0 = arith.constant 0 : i32
    %c0_i32_1 = arith.constant 0 : i32
    return %c0_i32, %c0_i32_0 : i32, i32
  }
  func.func @transform_4(%arg0: i32, %arg1: i32) -> (i32, i32) {
    %c0_i32 = arith.constant 0 : i32
    %c0_i32_0 = arith.constant 0 : i32
    %c0_i32_1 = arith.constant 0 : i32
    return %c0_i32, %c0_i32_0 : i32, i32
  }
  func.func @transform_5(%arg0: i32, %arg1: i32) -> (i32, i32) {
    %c0_i32 = arith.constant 0 : i32
    %c0_i32_0 = arith.constant 0 : i32
    %c0_i32_1 = arith.constant 0 : i32
    return %c0_i32, %c0_i32_0 : i32, i32
  }
  func.func @transform_6(%arg0: i32, %arg1: i32) -> (i32, i32) {
    %c0_i32 = arith.constant 0 : i32
    %c0_i32_0 = arith.constant 0 : i32
    %c0_i32_1 = arith.constant 0 : i32
    return %c0_i32, %c0_i32_0 : i32, i32
  }
  func.func @transform_7(%arg0: i32, %arg1: i32) -> (i32, i32) {
    %c0_i32 = arith.constant 0 : i32
    %c0_i32_0 = arith.constant 0 : i32
    %c0_i32_1 = arith.constant 0 : i32
    return %c0_i32, %c0_i32_0 : i32, i32
  }
  func.func @transform_8(%arg0: i32, %arg1: i32) -> (i32, i32) {
    %c0_i32 = arith.constant 0 : i32
    %c0_i32_0 = arith.constant 0 : i32
    %c0_i32_1 = arith.constant 0 : i32
    return %c0_i32, %c0_i32_0 : i32, i32
  }
  func.func @transform_9(%arg0: i32, %arg1: i32) -> (i32, i32, i32) {
    %c0_i32 = arith.constant 0 : i32
    %c0_i32_0 = arith.constant 0 : i32
    return %arg0, %arg1, %c0_i32 : i32, i32, i32
  }
}

</mosaic_0001>

<llo_original>
// kernel: _point_head_forward.1
$region0: #{_point_head_forward.1}
  #allocation0 [shape = 'u32[]', space=smem, size = 0x4, offset = 0x4, fixed_abs, tag = 'smem constant byte address 0x4 - core index']
  #allocation1 [shape = 'u32[144,128]{1,0:T(1,128)}', space=vmem, size = 0x12000, scoped, tag = 'internal scratch']
  %s0 = inlined_call_operand.vmem [shape: bf16[2,16,128], index: 0, kind: input, shape index: {}]
  %s1 = inlined_call_operand.vmem [shape: bf16[128,256], index: 1, kind: input, shape index: {}]
  %s2 = inlined_call_operand.vmem [shape: f32[1,256], index: 2, kind: input, shape index: {}]
  %s3 = inlined_call_operand.vmem [shape: bf16[256,256], index: 3, kind: input, shape index: {}]
  %s4 = inlined_call_operand.vmem [shape: f32[1,256], index: 4, kind: input, shape index: {}]
  %s5 = inlined_call_operand.vmem [shape: bf16[256,256], index: 5, kind: input, shape index: {}]
  %s6 = inlined_call_operand.vmem [shape: f32[1,256], index: 6, kind: input, shape index: {}]
  %s7 = inlined_call_operand.vmem [shape: bf16[256,128], index: 7, kind: input, shape index: {}]
  %s8 = inlined_call_operand.vmem [shape: f32[1,128], index: 8, kind: input, shape index: {}]
  %s9 = inlined_call_operand.vmem [shape: f32[2,16,128], index: 9, kind: output, shape index: {}]
  %s10 = sld [smem:[#allocation0]]
  $region69: #{_point_head_forward.1} parent=0
    _
  %s12 = ssub.s32 1, %s10
  %s13 = scalar_select 0, %s12, %s10
  loop: start=0, step=1, limit=4
  $region2: #{_point_head_forward.1} parent=0 // loop_pre_header
    _
  $region3: #{_point_head_forward.1} parent=0 // loop_header
    %s15 = sphi 0, %s19
    %p16 = scmp.ge.s32.totalorder %s15, 4
    %s22 = sphi 0, %s34
    %s23 = sphi 0, %s30
    %s24 = sphi 0, %s22
    %s25 = sphi 0, %s23
    %s26 = sphi 0, %s24
    %s27 = sphi 0, %s25
    %s39 = sphi 0, %s41
    %s42 = sphi 0, %s39
    %s43 = sphi 0, %s42
    %s59 = sphi 0, %s43
    %s63 = sphi 0, %s63
    %s65 = sphi 0, %s63
    %s66 = sphi 0, %s65
    %s80 = sphi 0, %s66
    %s84 = sphi 0, %s84
    %s86 = sphi 0, %s84
    %s87 = sphi 0, %s86
    %s101 = sphi 0, %s87
    %s105 = sphi 0, %s105
    %s107 = sphi 0, %s105
    %s108 = sphi 0, %s107
    %s122 = sphi 0, %s108
    %s126 = sphi 0, %s126
    %s128 = sphi 0, %s126
    %s129 = sphi 0, %s128
    %s143 = sphi 0, %s129
    %s147 = sphi 0, %s147
    %s149 = sphi 0, %s147
    %s150 = sphi 0, %s149
    %s164 = sphi 0, %s150
    %s168 = sphi 0, %s168
    %s170 = sphi 0, %s168
    %s171 = sphi 0, %s170
    %s185 = sphi 0, %s171
    %s189 = sphi 0, %s189
    %s191 = sphi 0, %s189
    %s192 = sphi 0, %s191
    %s206 = sphi 0, %s192
    %s210 = sphi 0, %s210
    %s212 = sphi 0, %s210
    %s213 = sphi 0, %s212
    %s227 = sphi 0, %s213
    %s235 = sphi 0, %s237
    %s238 = sphi 0, %s235
    %s239 = sphi 0, %s238
    %s255 = sphi 0, %s239
  $region4: #{_point_head_forward.1} parent=0 // loop_header_branch
    %18 = sbr.rel (%p16) target = $region8
  $region5: #{_point_head_forward.1} parent=0 // loop_body
    %s20 = ssub.s32 %s15, 1
    %s21 = ssub.s32 %s15, 2
    %s28 = sadd.s32 1, %s23
    %p29 = scmp.ge.s32.totalorder %s28, 1
    %s30 = scalar_select %p29, 0, %s28
    %s31 = sadd.s32 1, %s22
    %s32 = scalar_select %p29, %s31, %s22
    %p33 = scmp.ge.s32.totalorder %s32, 2
    %s34 = scalar_select %p33, 0, %s32
    %s35 = ssub.s32 %s22, %s34
    %s36 = ssub.s32 %s23, %s30
    %s37 = sor.u32 %s35, %s36
    %p38 = scmp.eq.s32.totalorder %s37, 0
    %s40 = sadd.s32 %s39, 1
    %s41 = scalar_select %p38, %s39, %s40
    %p44 = pneg %p38
    %p45 = scmp.eq.s32.totalorder %s15, 1
    %p46 = por %p44, %p45
    %p47 = scmp.ne.s32.totalorder %s39, %s42
    %p48 = scmp.eq.s32.totalorder %s15, 0
    %p49 = por %p47, %p48
    %p50 = scmp.ne.s32.totalorder %s39, %s42
    %p51 = scmp.eq.s32.totalorder %s20, 1
    %p52 = por %p50, %p51
    %p53 = scmp.ne.s32.totalorder %s42, %s43
    %p54 = scmp.eq.s32.totalorder %s20, 0
    %p55 = por %p53, %p54
    %p56 = scmp.ne.s32.totalorder %s42, %s43
    %p57 = scmp.eq.s32.totalorder %s21, 1
    %p58 = por %p56, %p57
    %p60 = scmp.ne.s32.totalorder %s43, %s59
    %p61 = scmp.eq.s32.totalorder %s21, 0
    %p62 = por %p60, %p61
    %s64 = sadd.s32 %s63, 1
    %p67 = scmp.eq.s32.totalorder %s15, 1
    %p68 = scmp.ne.s32.totalorder %s63, %s65
    %p69 = scmp.eq.s32.totalorder %s15, 0
    %p70 = por %p68, %p69
    %p71 = scmp.ne.s32.totalorder %s63, %s65
    %p72 = scmp.eq.s32.totalorder %s20, 1
    %p73 = por %p71, %p72
    %p74 = scmp.ne.s32.totalorder %s65, %s66
    %p75 = scmp.eq.s32.totalorder %s20, 0
    %p76 = por %p74, %p75
    %p77 = scmp.ne.s32.totalorder %s65, %s66
    %p78 = scmp.eq.s32.totalorder %s21, 1
    %p79 = por %p77, %p78
    %p81 = scmp.ne.s32.totalorder %s66, %s80
    %p82 = scmp.eq.s32.totalorder %s21, 0
    %p83 = por %p81, %p82
    %s85 = sadd.s32 %s84, 1
    %p88 = scmp.eq.s32.totalorder %s15, 1
    %p89 = scmp.ne.s32.totalorder %s84, %s86
    %p90 = scmp.eq.s32.totalorder %s15, 0
    %p91 = por %p89, %p90
    %p92 = scmp.ne.s32.totalorder %s84, %s86
    %p93 = scmp.eq.s32.totalorder %s20, 1
    %p94 = por %p92, %p93
    %p95 = scmp.ne.s32.totalorder %s86, %s87
    %p96 = scmp.eq.s32.totalorder %s20, 0
    %p97 = por %p95, %p96
    %p98 = scmp.ne.s32.totalorder %s86, %s87
    %p99 = scmp.eq.s32.totalorder %s21, 1
    %p100 = por %p98, %p99
    %p102 = scmp.ne.s32.totalorder %s87, %s101
    %p103 = scmp.eq.s32.totalorder %s21, 0
    %p104 = por %p102, %p103
    %s106 = sadd.s32 %s105, 1
    %p109 = scmp.eq.s32.totalorder %s15, 1
    %p110 = scmp.ne.s32.totalorder %s105, %s107
    %p111 = scmp.eq.s32.totalorder %s15, 0
    %p112 = por %p110, %p111
    %p113 = scmp.ne.s32.totalorder %s105, %s107
    %p114 = scmp.eq.s32.totalorder %s20, 1
    %p115 = por %p113, %p114
    %p116 = scmp.ne.s32.totalorder %s107, %s108
    %p117 = scmp.eq.s32.totalorder %s20, 0
    %p118 = por %p116, %p117
    %p119 = scmp.ne.s32.totalorder %s107, %s108
    %p120 = scmp.eq.s32.totalorder %s21, 1
    %p121 = por %p119, %p120
    %p123 = scmp.ne.s32.totalorder %s108, %s122
    %p124 = scmp.eq.s32.totalorder %s21, 0
    %p125 = por %p123, %p124
    %s127 = sadd.s32 %s126, 1
    %p130 = scmp.eq.s32.totalorder %s15, 1
    %p131 = scmp.ne.s32.totalorder %s126, %s128
    %p132 = scmp.eq.s32.totalorder %s15, 0
    %p133 = por %p131, %p132
    %p134 = scmp.ne.s32.totalorder %s126, %s128
    %p135 = scmp.eq.s32.totalorder %s20, 1
    %p136 = por %p134, %p135
    %p137 = scmp.ne.s32.totalorder %s128, %s129
    %p138 = scmp.eq.s32.totalorder %s20, 0
    %p139 = por %p137, %p138
    %p140 = scmp.ne.s32.totalorder %s128, %s129
    %p141 = scmp.eq.s32.totalorder %s21, 1
    %p142 = por %p140, %p141
    %p144 = scmp.ne.s32.totalorder %s129, %s143
    %p145 = scmp.eq.s32.totalorder %s21, 0
    %p146 = por %p144, %p145
    %s148 = sadd.s32 %s147, 1
    %p151 = scmp.eq.s32.totalorder %s15, 1
    %p152 = scmp.ne.s32.totalorder %s147, %s149
    %p153 = scmp.eq.s32.totalorder %s15, 0
    %p154 = por %p152, %p153
    %p155 = scmp.ne.s32.totalorder %s147, %s149
    %p156 = scmp.eq.s32.totalorder %s20, 1
    %p157 = por %p155, %p156
    %p158 = scmp.ne.s32.totalorder %s149, %s150
    %p159 = scmp.eq.s32.totalorder %s20, 0
    %p160 = por %p158, %p159
    %p161 = scmp.ne.s32.totalorder %s149, %s150
    %p162 = scmp.eq.s32.totalorder %s21, 1
    %p163 = por %p161, %p162
    %p165 = scmp.ne.s32.totalorder %s150, %s164
    %p166 = scmp.eq.s32.totalorder %s21, 0
    %p167 = por %p165, %p166
    %s169 = sadd.s32 %s168, 1
    %p172 = scmp.eq.s32.totalorder %s15, 1
    %p173 = scmp.ne.s32.totalorder %s168, %s170
    %p174 = scmp.eq.s32.totalorder %s15, 0
    %p175 = por %p173, %p174
    %p176 = scmp.ne.s32.totalorder %s168, %s170
    %p177 = scmp.eq.s32.totalorder %s20, 1
    %p178 = por %p176, %p177
    %p179 = scmp.ne.s32.totalorder %s170, %s171
    %p180 = scmp.eq.s32.totalorder %s20, 0
    %p181 = por %p179, %p180
    %p182 = scmp.ne.s32.totalorder %s170, %s171
    %p183 = scmp.eq.s32.totalorder %s21, 1
    %p184 = por %p182, %p183
    %p186 = scmp.ne.s32.totalorder %s171, %s185
    %p187 = scmp.eq.s32.totalorder %s21, 0
    %p188 = por %p186, %p187
    %s190 = sadd.s32 %s189, 1
    %p193 = scmp.eq.s32.totalorder %s15, 1
    %p194 = scmp.ne.s32.totalorder %s189, %s191
    %p195 = scmp.eq.s32.totalorder %s15, 0
    %p196 = por %p194, %p195
    %p197 = scmp.ne.s32.totalorder %s189, %s191
    %p198 = scmp.eq.s32.totalorder %s20, 1
    %p199 = por %p197, %p198
    %p200 = scmp.ne.s32.totalorder %s191, %s192
    %p201 = scmp.eq.s32.totalorder %s20, 0
    %p202 = por %p200, %p201
    %p203 = scmp.ne.s32.totalorder %s191, %s192
    %p204 = scmp.eq.s32.totalorder %s21, 1
    %p205 = por %p203, %p204
    %p207 = scmp.ne.s32.totalorder %s192, %s206
    %p208 = scmp.eq.s32.totalorder %s21, 0
    %p209 = por %p207, %p208
    %s211 = sadd.s32 %s210, 1
    %p214 = scmp.eq.s32.totalorder %s15, 1
    %p215 = scmp.ne.s32.totalorder %s210, %s212
    %p216 = scmp.eq.s32.totalorder %s15, 0
    %p217 = por %p215, %p216
    %p218 = scmp.ne.s32.totalorder %s210, %s212
    %p219 = scmp.eq.s32.totalorder %s20, 1
    %p220 = por %p218, %p219
    %p221 = scmp.ne.s32.totalorder %s212, %s213
    %p222 = scmp.eq.s32.totalorder %s20, 0
    %p223 = por %p221, %p222
    %p224 = scmp.ne.s32.totalorder %s212, %s213
    %p225 = scmp.eq.s32.totalorder %s21, 1
    %p226 = por %p224, %p225
    %p228 = scmp.ne.s32.totalorder %s213, %s227
    %p229 = scmp.eq.s32.totalorder %s21, 0
    %p230 = por %p228, %p229
    %s231 = ssub.s32 %s22, %s34
    %s232 = ssub.s32 %s23, %s30
    %s233 = sor.u32 %s231, %s232
    %p234 = scmp.eq.s32.totalorder %s233, 0
    %s236 = sadd.s32 %s235, 1
    %s237 = scalar_select %p234, %s235, %s236
    %p240 = pneg %p234
    %p241 = scmp.eq.s32.totalorder %s15, 1
    %p242 = por %p240, %p241
    %p243 = scmp.ne.s32.totalorder %s235, %s238
    %p244 = scmp.eq.s32.totalorder %s15, 0
    %p245 = por %p243, %p244
    %p246 = scmp.ne.s32.totalorder %s235, %s238
    %p247 = scmp.eq.s32.totalorder %s20, 1
    %p248 = por %p246, %p247
    %p249 = scmp.ne.s32.totalorder %s238, %s239
    %p250 = scmp.eq.s32.totalorder %s20, 0
    %p251 = por %p249, %p250
    %p252 = scmp.ne.s32.totalorder %s238, %s239
    %p253 = scmp.eq.s32.totalorder %s21, 1
    %p254 = por %p252, %p253
    %p256 = scmp.ne.s32.totalorder %s239, %s255
    %p257 = scmp.eq.s32.totalorder %s21, 0
    %p258 = por %p256, %p257
    %p259 = scmp.le.s32.totalorder 1, %s15
    %p260 = scmp.lt.s32.totalorder %s15, 3
    %p261 = pnand %p259, %p260
    %p262 = pneg %p261
    // Predicated region
    $region9: #{_point_head_forward.1} parent=5 // pred_check
      _
    $region10: #{_point_head_forward.1} parent=5 // pred_check_branch
      %264 = sbr.rel (%p261) target = $region12
    $region11: #{_point_head_forward.1} parent=5 // pred_region
      %s265 = ssub.s32 %s15, 1
      // Predicated region
      $region13: #{_point_head_forward.1} parent=11 // pred_check
        %p266 = pneg %p76
      $region14: #{_point_head_forward.1} parent=11 // pred_check_branch
        %268 = sbr.rel (%p266) target = $region16
      $region15: #{_point_head_forward.1} parent=11 // pred_region
        _
      $region16: #{_point_head_forward.1} parent=11 // pred_fallthru
        _
      // Predicated region
      $region17: #{_point_head_forward.1} parent=11 // pred_check
        %p269 = pneg %p97
      $region18: #{_point_head_forward.1} parent=11 // pred_check_branch
        %271 = sbr.rel (%p269) target = $region20
      $region19: #{_point_head_forward.1} parent=11 // pred_region
        _
      $region20: #{_point_head_forward.1} parent=11 // pred_fallthru
        _
      // Predicated region
      $region21: #{_point_head_forward.1} parent=11 // pred_check
        %p272 = pneg %p118
      $region22: #{_point_head_forward.1} parent=11 // pred_check_branch
        %274 = sbr.rel (%p272) target = $region24
      $region23: #{_point_head_forward.1} parent=11 // pred_region
        _
      $region24: #{_point_head_forward.1} parent=11 // pred_fallthru
        _
      // Predicated region
      $region25: #{_point_head_forward.1} parent=11 // pred_check
        %p275 = pneg %p139
      $region26: #{_point_head_forward.1} parent=11 // pred_check_branch
        %277 = sbr.rel (%p275) target = $region28
      $region27: #{_point_head_forward.1} parent=11 // pred_region
        _
      $region28: #{_point_head_forward.1} parent=11 // pred_fallthru
        _
      // Predicated region
      $region29: #{_point_head_forward.1} parent=11 // pred_check
        %p278 = pneg %p160
      $region30: #{_point_head_forward.1} parent=11 // pred_check_branch
        %280 = sbr.rel (%p278) target = $region32
      $region31: #{_point_head_forward.1} parent=11 // pred_region
        _
      $region32: #{_point_head_forward.1} parent=11 // pred_fallthru
        _
      // Predicated region
      $region33: #{_point_head_forward.1} parent=11 // pred_check
        %p281 = pneg %p181
      $region34: #{_point_head_forward.1} parent=11 // pred_check_branch
        %283 = sbr.rel (%p281) target = $region36
      $region35: #{_point_head_forward.1} parent=11 // pred_region
        _
      $region36: #{_point_head_forward.1} parent=11 // pred_fallthru
        _
      // Predicated region
      $region37: #{_point_head_forward.1} parent=11 // pred_check
        %p284 = pneg %p202
      $region38: #{_point_head_forward.1} parent=11 // pred_check_branch
        %286 = sbr.rel (%p284) target = $region40
      $region39: #{_point_head_forward.1} parent=11 // pred_region
        _
      $region40: #{_point_head_forward.1} parent=11 // pred_fallthru
        _
      // Predicated region
      $region41: #{_point_head_forward.1} parent=11 // pred_check
        %p287 = pneg %p223
      $region42: #{_point_head_forward.1} parent=11 // pred_check_branch
        %289 = sbr.rel (%p287) target = $region44
      $region43: #{_point_head_forward.1} parent=11 // pred_region
        _
      $region44: #{_point_head_forward.1} parent=11 // pred_fallthru
        _
    $region12: #{_point_head_forward.1} parent=5 // pred_fallthru
      _
    %p290 = scmp.lt.s32.totalorder %s15, 2
    // Predicated region
    $region45: #{_point_head_forward.1} parent=5 // pred_check
      %p291 = pneg %p290
    $region46: #{_point_head_forward.1} parent=5 // pred_check_branch
      %293 = sbr.rel (%p291) target = $region48
    $region47: #{_point_head_forward.1} parent=5 // pred_region
      // Predicated region
      $region49: #{_point_head_forward.1} parent=47 // pred_check
        %p294 = pneg %p49
      $region50: #{_point_head_forward.1} parent=47 // pred_check_branch
        %296 = sbr.rel (%p294) target = $region52
      $region51: #{_point_head_forward.1} parent=47 // pred_region
        %s297 = smul.u32 2, %s23
        %p298 = scmp.lt.s32.totalorder %s22, 1
        %s299 = scalar_select %p298, %s22, 1
        %p300 = scmp.lt.s32.totalorder %s297, 1
        %s301 = scalar_select %p300, %s297, 1
        %s302 = smul.addr %s299, 2
        %s303 = sadd.s32 %s301, %s302
        %s304 = smul.addr %s303, 4
        %s305 = scalar_lea.vmem %s0, %s304
        %s306 = smul.u32 2, %s23
      $region52: #{_point_head_forward.1} parent=47 // pred_fallthru
        _
    $region48: #{_point_head_forward.1} parent=5 // pred_fallthru
      _
    %p307 = scmp.le.s32.totalorder 1, %s15
    %p308 = scmp.lt.s32.totalorder %s15, 3
    %p309 = pnand %p307, %p308
    %p310 = pneg %p309
    // Predicated region
    $region53: #{_point_head_forward.1} parent=5 // pred_check
      _
    $region54: #{_point_head_forward.1} parent=5 // pred_check_branch
      %312 = sbr.rel (%p309) target = $region56
    $region55: #{_point_head_forward.1} parent=5 // pred_region
      %s313 = ssub.s32 %s15, 1
      %s314 = smul.u32 2, %s25
      %p315 = scmp.lt.s32.totalorder %s24, 1
      %s316 = scalar_select %p315, %s24, 1
      %p317 = scmp.lt.s32.totalorder %s314, 1
      %s318 = scalar_select %p317, %s314, 1
      %s319 = smul.addr %s316, 2
      %s320 = sadd.s32 %s318, %s319
      %s321 = smul.addr %s320, 4
      %s322 = scalar_lea.vmem %s0, %s321
      %p323 = pneg %p55
      %p324 = pneg %p52
      %p325 = pneg %p76
      %p326 = pneg %p73
      %p327 = pneg %p97
      %p328 = pneg %p94
      %p329 = pneg %p118
      %p330 = pneg %p115
      %p331 = pneg %p139
      %p332 = pneg %p136
      %p333 = pneg %p160
      %p334 = pneg %p157
      %p335 = pneg %p181
      %p336 = pneg %p178
      %p337 = pneg %p202
      %p338 = pneg %p199
      %p339 = pneg %p223
      %p340 = pneg %p220
      %p341 = pneg %p251
      %p342 = pneg %p248
      %s343 = smul.u32 2, %s25
      %p344 = scmp.lt.s32.totalorder %s24, 1
      %s345 = scalar_select %p344, %s24, 1
      %p346 = scmp.lt.s32.totalorder %s343, 1
      %s347 = scalar_select %p346, %s343, 1
      %s348 = smul.addr %s345, 2
      %s349 = sadd.s32 %s347, %s348
      %s350 = smul.addr %s349, 8
      %s351 = scalar_lea.vmem %s9, %s350
      %s352 = smul.u32 2, %s25
      %p353 = scmp.lt.s32.totalorder %s24, 1
      %s354 = scalar_select %p353, %s24, 1
      %p355 = scmp.lt.s32.totalorder %s352, 1
      %s356 = scalar_select %p355, %s352, 1
      %s357 = smul.addr %s354, 2
      %s358 = sadd.s32 %s356, %s357
      %s359 = smul.addr %s358, 4
      %s360 = scalar_lea.vmem %s0, %s359
      %s361 = smul.u32 2, %s25
      %s362 = smul.u32 2, %s25
      %p363 = scmp.lt.s32.totalorder %s24, 1
      %s364 = scalar_select %p363, %s24, 1
      %p365 = scmp.lt.s32.totalorder %s362, 1
      %s366 = scalar_select %p365, %s362, 1
      %s367 = smul.addr %s364, 2
      %s368 = sadd.s32 %s366, %s367
      %s369 = smul.addr %s368, 8
      %s370 = scalar_lea.vmem %s9, %s369
      %s371 = smul.u32 2, %s25
      %v373 = vld [vmem:[%s360] sm:$0xf]
      %v374 = vld [vmem:[%s360 + $0x4] sm:$0xf]
      %v375 = vld [vmem:[%s1] sm:$0xff]
      %v376 = vld [vmem:[%s1 + $0x8] sm:$0xff]
      %v377 = vld [vmem:[%s1 + $0x10] sm:$0xff]
      %v378 = vld [vmem:[%s1 + $0x18] sm:$0xff]
      %v379 = vld [vmem:[%s1 + $0x20] sm:$0xff]
      %v380 = vld [vmem:[%s1 + $0x28] sm:$0xff]
      %v381 = vld [vmem:[%s1 + $0x30] sm:$0xff]
      %v382 = vld [vmem:[%s1 + $0x38] sm:$0xff]
      %v383 = vld [vmem:[%s1 + $0x40] sm:$0xff]
      %v384 = vld [vmem:[%s1 + $0x48] sm:$0xff]
      %v385 = vld [vmem:[%s1 + $0x50] sm:$0xff]
      %v386 = vld [vmem:[%s1 + $0x58] sm:$0xff]
      %v387 = vld [vmem:[%s1 + $0x60] sm:$0xff]
      %v388 = vld [vmem:[%s1 + $0x68] sm:$0xff]
      %v389 = vld [vmem:[%s1 + $0x70] sm:$0xff]
      %v390 = vld [vmem:[%s1 + $0x78] sm:$0xff]
      %v391 = vld [vmem:[%s2] sm:$0x3]
      %v393 = vlaneseq
      %v394 = vshrl.u32 %v393, 7
      %v395 = vsub.s32 0, %v394
      %v396 = vrot.slane %v391, %v395
      %v397 = vlaneseq
      %v398 = vshrl.u32 %v397, 7
      %v399 = vsub.s32 1, %v398
      %v400 = vrot.slane %v391, %v399
      %v405 = vunpack.c.l.b16 %v373
      %v406 = vunpack.c.l.b16 %v374
      %v407 = vpack.c.b16 %v406, %v405
      %v425 = vunpack.c.l.b16 %v375
      %v426 = vunpack.c.h.b16 %v375
      %v427 = vunpack.c.l.b16 %v376
      %v428 = vunpack.c.h.b16 %v376
      %v429 = vunpack.c.l.b16 %v377
      %v430 = vunpack.c.h.b16 %v377
      %v431 = vunpack.c.l.b16 %v378
      %v432 = vunpack.c.h.b16 %v378
      %v433 = vunpack.c.l.b16 %v379
      %v434 = vunpack.c.h.b16 %v379
      %v435 = vunpack.c.l.b16 %v380
      %v436 = vunpack.c.h.b16 %v380
      %v437 = vunpack.c.l.b16 %v381
      %v438 = vunpack.c.h.b16 %v381
      %v439 = vunpack.c.l.b16 %v382
      %v440 = vunpack.c.h.b16 %v382
      %v441 = vunpack.c.l.b16 %v383
      %v442 = vunpack.c.h.b16 %v383
      %v443 = vunpack.c.l.b16 %v384
      %v444 = vunpack.c.h.b16 %v384
      %v445 = vunpack.c.l.b16 %v385
      %v446 = vunpack.c.h.b16 %v385
      %v447 = vunpack.c.l.b16 %v386
      %v448 = vunpack.c.h.b16 %v386
      %v449 = vunpack.c.l.b16 %v387
      %v450 = vunpack.c.h.b16 %v387
      %v451 = vunpack.c.l.b16 %v388
      %v452 = vunpack.c.h.b16 %v388
      %v453 = vunpack.c.l.b16 %v389
      %v454 = vunpack.c.h.b16 %v389
      %v455 = vunpack.c.l.b16 %v390
      %v456 = vunpack.c.h.b16 %v390
      %v457 = vpack.c.b16 %v427, %v425
      %v458 = vpack.c.b16 %v428, %v426
      %v459 = vpack.c.b16 %v431, %v429
      %v460 = vpack.c.b16 %v432, %v430
      %v461 = vpack.c.b16 %v435, %v433
      %v462 = vpack.c.b16 %v436, %v434
      %v463 = vpack.c.b16 %v439, %v437
      %v464 = vpack.c.b16 %v440, %v438
      %v465 = vpack.c.b16 %v443, %v441
      %v466 = vpack.c.b16 %v444, %v442
      %v467 = vpack.c.b16 %v447, %v445
      %v468 = vpack.c.b16 %v448, %v446
      %v469 = vpack.c.b16 %v451, %v449
      %v470 = vpack.c.b16 %v452, %v450
      %v471 = vpack.c.b16 %v455, %v453
      %v472 = vpack.c.b16 %v456, %v454
      %489 = vmatprep.subr.bf16.mxu0 %v472
      %490 = vmatpush1.bf16.msra.mxu0 %v471
      %491 = vmatprep.subr.bf16.mxu0 %v470
      %492 = vmatpush1.bf16.msra.mxu0 %v469
      %493 = vmatprep.subr.bf16.mxu0 %v468
      %494 = vmatpush1.bf16.msra.mxu0 %v467
      %495 = vmatprep.subr.bf16.mxu0 %v466
      %496 = vmatpush1.bf16.msra.mxu0 %v465
      %497 = vmatprep.subr.bf16.mxu0 %v464
      %498 = vmatpush1.bf16.msra.mxu0 %v463
      %499 = vmatprep.subr.bf16.mxu0 %v462
      %500 = vmatpush1.bf16.msra.mxu0 %v461
      %501 = vmatprep.subr.bf16.mxu0 %v460
      %502 = vmatpush1.bf16.msra.mxu0 %v459
      %503 = vmatprep.subr.bf16.mxu0 %v458
      %504 = vmatpush1.bf16.msra.mxu0 %v457
      %505 = vmatprep.subr.bf16.mxu0 0
      %506 = vmatpush2.bf16.msra.mxu0 0
      %507 = vmatprep.subr.bf16.mxu0 0
      %508 = vmatpush2.bf16.msra.mxu0 0
      %509 = vmatprep.subr.bf16.mxu0 0
      %510 = vmatpush2.bf16.msra.mxu0 0
      %511 = vmatprep.subr.bf16.mxu0 0
      %512 = vmatpush2.bf16.msra.mxu0 0
      %513 = vmatprep.subr.bf16.mxu0 0
      %514 = vmatpush2.bf16.msra.mxu0 0
      %515 = vmatprep.subr.bf16.mxu0 0
      %516 = vmatpush2.bf16.msra.mxu0 0
      %517 = vmatprep.subr.bf16.mxu0 0
      %518 = vmatpush2.bf16.msra.mxu0 0
      %519 = vmatprep.subr.bf16.mxu0 0
      %520 = vmatpush2.bf16.msra.mxu0 0
      %521 = vmatprep.mubr.bf16.mxu0 0
      %522 = vmatmul.mubr.bf16.gmra.mxu0 %v407
      %v523 = vpop.f32.mrf.mxu0
      %v524 = vadd.f32 %v396, %v523
      %v525 = vpop.f32.mrf.mxu0
      %v526 = vadd.f32 %v400, %v525
      %v527 = vpop.f32.mrf.mxu0
      %v528 = vadd.f32 %v396, %v527
      %v529 = vpop.f32.mrf.mxu0
      %v530 = vadd.f32 %v400, %v529
      %531 = vdwg.mxu0
      %v532 = vmax.f32 %v524, 0.0
      %v533 = vmax.f32 %v526, 0.0
      %v534 = vmax.f32 %v528, 0.0
      %v535 = vmax.f32 %v530, 0.0
      %v536 = vpack.c.bf16 %v534, %v532
      %v537 = vpack.c.bf16 %v535, %v533
      %v538 = vld [vmem:[%s3] sm:$0xff]
      %v539 = vld [vmem:[%s3 + $0x8] sm:$0xff]
      %v540 = vld [vmem:[%s3 + $0x10] sm:$0xff]
      %v541 = vld [vmem:[%s3 + $0x18] sm:$0xff]
      %v542 = vld [vmem:[%s3 + $0x20] sm:$0xff]
      %v543 = vld [vmem:[%s3 + $0x28] sm:$0xff]
      %v544 = vld [vmem:[%s3 + $0x30] sm:$0xff]
      %v545 = vld [vmem:[%s3 + $0x38] sm:$0xff]
      %v546 = vld [vmem:[%s3 + $0x40] sm:$0xff]
      %v547 = vld [vmem:[%s3 + $0x48] sm:$0xff]
      %v548 = vld [vmem:[%s3 + $0x50] sm:$0xff]
      %v549 = vld [vmem:[%s3 + $0x58] sm:$0xff]
      %v550 = vld [vmem:[%s3 + $0x60] sm:$0xff]
      %v551 = vld [vmem:[%s3 + $0x68] sm:$0xff]
      %v552 = vld [vmem:[%s3 + $0x70] sm:$0xff]
      %v553 = vld [vmem:[%s3 + $0x78] sm:$0xff]
      %v554 = vld [vmem:[%s3 + $0x80] sm:$0xff]
      %v555 = vld [vmem:[%s3 + $0x88] sm:$0xff]
      %v556 = vld [vmem:[%s3 + $0x90] sm:$0xff]
      %v557 = vld [vmem:[%s3 + $0x98] sm:$0xff]
      %v558 = vld [vmem:[%s3 + $0xa0] sm:$0xff]
      %v559 = vld [vmem:[%s3 + $0xa8] sm:$0xff]
      %v560 = vld [vmem:[%s3 + $0xb0] sm:$0xff]
      %v561 = vld [vmem:[%s3 + $0xb8] sm:$0xff]
      %v562 = vld [vmem:[%s3 + $0xc0] sm:$0xff]
      %v563 = vld [vmem:[%s3 + $0xc8] sm:$0xff]
      %v564 = vld [vmem:[%s3 + $0xd0] sm:$0xff]
      %v565 = vld [vmem:[%s3 + $0xd8] sm:$0xff]
      %v566 = vld [vmem:[%s3 + $0xe0] sm:$0xff]
      %v567 = vld [vmem:[%s3 + $0xe8] sm:$0xff]
      %v568 = vld [vmem:[%s3 + $0xf0] sm:$0xff]
      %v569 = vld [vmem:[%s3 + $0xf8] sm:$0xff]
      %v570 = vld [vmem:[%s4] sm:$0x3]
      %v572 = vlaneseq
      %v573 = vshrl.u32 %v572, 7
      %v574 = vsub.s32 0, %v573
      %v575 = vrot.slane %v570, %v574
      %v576 = vlaneseq
      %v577 = vshrl.u32 %v576, 7
      %v578 = vsub.s32 1, %v577
      %v579 = vrot.slane %v570, %v578
      %v614 = vunpack.c.l.b16 %v538
      %v615 = vunpack.c.h.b16 %v538
      %v616 = vunpack.c.l.b16 %v539
      %v617 = vunpack.c.h.b16 %v539
      %v618 = vunpack.c.l.b16 %v540
      %v619 = vunpack.c.h.b16 %v540
      %v620 = vunpack.c.l.b16 %v541
      %v621 = vunpack.c.h.b16 %v541
      %v622 = vunpack.c.l.b16 %v542
      %v623 = vunpack.c.h.b16 %v542
      %v624 = vunpack.c.l.b16 %v543
      %v625 = vunpack.c.h.b16 %v543
      %v626 = vunpack.c.l.b16 %v544
      %v627 = vunpack.c.h.b16 %v544
      %v628 = vunpack.c.l.b16 %v545
      %v629 = vunpack.c.h.b16 %v545
      %v630 = vunpack.c.l.b16 %v546
      %v631 = vunpack.c.h.b16 %v546
      %v632 = vunpack.c.l.b16 %v547
      %v633 = vunpack.c.h.b16 %v547
      %v634 = vunpack.c.l.b16 %v548
      %v635 = vunpack.c.h.b16 %v548
      %v636 = vunpack.c.l.b16 %v549
      %v637 = vunpack.c.h.b16 %v549
      %v638 = vunpack.c.l.b16 %v550
      %v639 = vunpack.c.h.b16 %v550
      %v640 = vunpack.c.l.b16 %v551
      %v641 = vunpack.c.h.b16 %v551
      %v642 = vunpack.c.l.b16 %v552
      %v643 = vunpack.c.h.b16 %v552
      %v644 = vunpack.c.l.b16 %v553
      %v645 = vunpack.c.h.b16 %v553
      %v646 = vunpack.c.l.b16 %v554
      %v647 = vunpack.c.h.b16 %v554
      %v648 = vunpack.c.l.b16 %v555
      %v649 = vunpack.c.h.b16 %v555
      %v650 = vunpack.c.l.b16 %v556
      %v651 = vunpack.c.h.b16 %v556
      %v652 = vunpack.c.l.b16 %v557
      %v653 = vunpack.c.h.b16 %v557
      %v654 = vunpack.c.l.b16 %v558
      %v655 = vunpack.c.h.b16 %v558
      %v656 = vunpack.c.l.b16 %v559
      %v657 = vunpack.c.h.b16 %v559
      %v658 = vunpack.c.l.b16 %v560
      %v659 = vunpack.c.h.b16 %v560
      %v660 = vunpack.c.l.b16 %v561
      %v661 = vunpack.c.h.b16 %v561
      %v662 = vunpack.c.l.b16 %v562
      %v663 = vunpack.c.h.b16 %v562
      %v664 = vunpack.c.l.b16 %v563
      %v665 = vunpack.c.h.b16 %v563
      %v666 = vunpack.c.l.b16 %v564
      %v667 = vunpack.c.h.b16 %v564
      %v668 = vunpack.c.l.b16 %v565
      %v669 = vunpack.c.h.b16 %v565
      %v670 = vunpack.c.l.b16 %v566
      %v671 = vunpack.c.h.b16 %v566
      %v672 = vunpack.c.l.b16 %v567
      %v673 = vunpack.c.h.b16 %v567
      %v674 = vunpack.c.l.b16 %v568
      %v675 = vunpack.c.h.b16 %v568
      %v676 = vunpack.c.l.b16 %v569
      %v677 = vunpack.c.h.b16 %v569
      %v678 = vpack.c.b16 %v616, %v614
      %v679 = vpack.c.b16 %v617, %v615
      %v680 = vpack.c.b16 %v620, %v618
      %v681 = vpack.c.b16 %v621, %v619
      %v682 = vpack.c.b16 %v624, %v622
      %v683 = vpack.c.b16 %v625, %v623
      %v684 = vpack.c.b16 %v628, %v626
      %v685 = vpack.c.b16 %v629, %v627
      %v686 = vpack.c.b16 %v632, %v630
      %v687 = vpack.c.b16 %v633, %v631
      %v688 = vpack.c.b16 %v636, %v634
      %v689 = vpack.c.b16 %v637, %v635
      %v690 = vpack.c.b16 %v640, %v638
      %v691 = vpack.c.b16 %v641, %v639
      %v692 = vpack.c.b16 %v644, %v642
      %v693 = vpack.c.b16 %v645, %v643
      %v694 = vpack.c.b16 %v648, %v646
      %v695 = vpack.c.b16 %v649, %v647
      %v696 = vpack.c.b16 %v652, %v650
      %v697 = vpack.c.b16 %v653, %v651
      %v698 = vpack.c.b16 %v656, %v654
      %v699 = vpack.c.b16 %v657, %v655
      %v700 = vpack.c.b16 %v660, %v658
      %v701 = vpack.c.b16 %v661, %v659
      %v702 = vpack.c.b16 %v664, %v662
      %v703 = vpack.c.b16 %v665, %v663
      %v704 = vpack.c.b16 %v668, %v666
      %v705 = vpack.c.b16 %v669, %v667
      %v706 = vpack.c.b16 %v672, %v670
      %v707 = vpack.c.b16 %v673, %v671
      %v708 = vpack.c.b16 %v676, %v674
      %v709 = vpack.c.b16 %v677, %v675
      %742 = vmatprep.subr.bf16.mxu0 %v693
      %743 = vmatpush1.bf16.msra.mxu0 %v692
      %744 = vmatprep.subr.bf16.mxu0 %v691
      %745 = vmatpush1.bf16.msra.mxu0 %v690
      %746 = vmatprep.subr.bf16.mxu0 %v689
      %747 = vmatpush1.bf16.msra.mxu0 %v688
      %748 = vmatprep.subr.bf16.mxu0 %v687
      %749 = vmatpush1.bf16.msra.mxu0 %v686
      %750 = vmatprep.subr.bf16.mxu0 %v685
      %751 = vmatpush1.bf16.msra.mxu0 %v684
      %752 = vmatprep.subr.bf16.mxu0 %v683
      %753 = vmatpush1.bf16.msra.mxu0 %v682
      %754 = vmatprep.subr.bf16.mxu0 %v681
      %755 = vmatpush1.bf16.msra.mxu0 %v680
      %756 = vmatprep.subr.bf16.mxu0 %v679
      %757 = vmatpush1.bf16.msra.mxu0 %v678
      %758 = vmatprep.subr.bf16.mxu0 %v709
      %759 = vmatpush2.bf16.msra.mxu0 %v708
      %760 = vmatprep.subr.bf16.mxu0 %v707
      %761 = vmatpush2.bf16.msra.mxu0 %v706
      %762 = vmatprep.subr.bf16.mxu0 %v705
      %763 = vmatpush2.bf16.msra.mxu0 %v704
      %764 = vmatprep.subr.bf16.mxu0 %v703
      %765 = vmatpush2.bf16.msra.mxu0 %v702
      %766 = vmatprep.subr.bf16.mxu0 %v701
      %767 = vmatpush2.bf16.msra.mxu0 %v700
      %768 = vmatprep.subr.bf16.mxu0 %v699
      %769 = vmatpush2.bf16.msra.mxu0 %v698
      %770 = vmatprep.subr.bf16.mxu0 %v697
      %771 = vmatpush2.bf16.msra.mxu0 %v696
      %772 = vmatprep.subr.bf16.mxu0 %v695
      %773 = vmatpush2.bf16.msra.mxu0 %v694
      %774 = vmatprep.mubr.bf16.mxu0 %v537
      %775 = vmatmul.mubr.bf16.gmra.mxu0 %v536
      %v776 = vpop.f32.mrf.mxu0
      %v777 = vadd.f32 %v575, %v776
      %v778 = vpop.f32.mrf.mxu0
      %v779 = vadd.f32 %v579, %v778
      %v780 = vpop.f32.mrf.mxu0
      %v781 = vadd.f32 %v575, %v780
      %v782 = vpop.f32.mrf.mxu0
      %v783 = vadd.f32 %v579, %v782
      %784 = vdwg.mxu0
      %v785 = vmax.f32 %v777, 0.0
      %v786 = vmax.f32 %v779, 0.0
      %v787 = vmax.f32 %v781, 0.0
      %v788 = vmax.f32 %v783, 0.0
      %v789 = vpack.c.bf16 %v787, %v785
      %v790 = vpack.c.bf16 %v788, %v786
      %v791 = vld [vmem:[%s5] sm:$0xff]
      %v792 = vld [vmem:[%s5 + $0x8] sm:$0xff]
      %v793 = vld [vmem:[%s5 + $0x10] sm:$0xff]
      %v794 = vld [vmem:[%s5 + $0x18] sm:$0xff]
      %v795 = vld [vmem:[%s5 + $0x20] sm:$0xff]
      %v796 = vld [vmem:[%s5 + $0x28] sm:$0xff]
      %v797 = vld [vmem:[%s5 + $0x30] sm:$0xff]
      %v798 = vld [vmem:[%s5 + $0x38] sm:$0xff]
      %v799 = vld [vmem:[%s5 + $0x40] sm:$0xff]
      %v800 = vld [vmem:[%s5 + $0x48] sm:$0xff]
      %v801 = vld [vmem:[%s5 + $0x50] sm:$0xff]
      %v802 = vld [vmem:[%s5 + $0x58] sm:$0xff]
      %v803 = vld [vmem:[%s5 + $0x60] sm:$0xff]
      %v804 = vld [vmem:[%s5 + $0x68] sm:$0xff]
      %v805 = vld [vmem:[%s5 + $0x70] sm:$0xff]
      %v806 = vld [vmem:[%s5 + $0x78] sm:$0xff]
      %v807 = vld [vmem:[%s5 + $0x80] sm:$0xff]
      %v808 = vld [vmem:[%s5 + $0x88] sm:$0xff]
      %v809 = vld [vmem:[%s5 + $0x90] sm:$0xff]
      %v810 = vld [vmem:[%s5 + $0x98] sm:$0xff]
      %v811 = vld [vmem:[%s5 + $0xa0] sm:$0xff]
      %v812 = vld [vmem:[%s5 + $0xa8] sm:$0xff]
      %v813 = vld [vmem:[%s5 + $0xb0] sm:$0xff]
      %v814 = vld [vmem:[%s5 + $0xb8] sm:$0xff]
      %v815 = vld [vmem:[%s5 + $0xc0] sm:$0xff]
      %v816 = vld [vmem:[%s5 + $0xc8] sm:$0xff]
      %v817 = vld [vmem:[%s5 + $0xd0] sm:$0xff]
      %v818 = vld [vmem:[%s5 + $0xd8] sm:$0xff]
      %v819 = vld [vmem:[%s5 + $0xe0] sm:$0xff]
      %v820 = vld [vmem:[%s5 + $0xe8] sm:$0xff]
      %v821 = vld [vmem:[%s5 + $0xf0] sm:$0xff]
      %v822 = vld [vmem:[%s5 + $0xf8] sm:$0xff]
      %v823 = vld [vmem:[%s6] sm:$0x3]
      %v825 = vlaneseq
      %v826 = vshrl.u32 %v825, 7
      %v827 = vsub.s32 0, %v826
      %v828 = vrot.slane %v823, %v827
      %v829 = vlaneseq
      %v830 = vshrl.u32 %v829, 7
      %v831 = vsub.s32 1, %v830
      %v832 = vrot.slane %v823, %v831
      %v867 = vunpack.c.l.b16 %v791
      %v868 = vunpack.c.h.b16 %v791
      %v869 = vunpack.c.l.b16 %v792
      %v870 = vunpack.c.h.b16 %v792
      %v871 = vunpack.c.l.b16 %v793
      %v872 = vunpack.c.h.b16 %v793
      %v873 = vunpack.c.l.b16 %v794
      %v874 = vunpack.c.h.b16 %v794
      %v875 = vunpack.c.l.b16 %v795
      %v876 = vunpack.c.h.b16 %v795
      %v877 = vunpack.c.l.b16 %v796
      %v878 = vunpack.c.h.b16 %v796
      %v879 = vunpack.c.l.b16 %v797
      %v880 = vunpack.c.h.b16 %v797
      %v881 = vunpack.c.l.b16 %v798
      %v882 = vunpack.c.h.b16 %v798
      %v883 = vunpack.c.l.b16 %v799
      %v884 = vunpack.c.h.b16 %v799
      %v885 = vunpack.c.l.b16 %v800
      %v886 = vunpack.c.h.b16 %v800
      %v887 = vunpack.c.l.b16 %v801
      %v888 = vunpack.c.h.b16 %v801
      %v889 = vunpack.c.l.b16 %v802
      %v890 = vunpack.c.h.b16 %v802
      %v891 = vunpack.c.l.b16 %v803
      %v892 = vunpack.c.h.b16 %v803
      %v893 = vunpack.c.l.b16 %v804
      %v894 = vunpack.c.h.b16 %v804
      %v895 = vunpack.c.l.b16 %v805
      %v896 = vunpack.c.h.b16 %v805
      %v897 = vunpack.c.l.b16 %v806
      %v898 = vunpack.c.h.b16 %v806
      %v899 = vunpack.c.l.b16 %v807
      %v900 = vunpack.c.h.b16 %v807
      %v901 = vunpack.c.l.b16 %v808
      %v902 = vunpack.c.h.b16 %v808
      %v903 = vunpack.c.l.b16 %v809
      %v904 = vunpack.c.h.b16 %v809
      %v905 = vunpack.c.l.b16 %v810
      %v906 = vunpack.c.h.b16 %v810
      %v907 = vunpack.c.l.b16 %v811
      %v908 = vunpack.c.h.b16 %v811
      %v909 = vunpack.c.l.b16 %v812
      %v910 = vunpack.c.h.b16 %v812
      %v911 = vunpack.c.l.b16 %v813
      %v912 = vunpack.c.h.b16 %v813
      %v913 = vunpack.c.l.b16 %v814
      %v914 = vunpack.c.h.b16 %v814
      %v915 = vunpack.c.l.b16 %v815
      %v916 = vunpack.c.h.b16 %v815
      %v917 = vunpack.c.l.b16 %v816
      %v918 = vunpack.c.h.b16 %v816
      %v919 = vunpack.c.l.b16 %v817
      %v920 = vunpack.c.h.b16 %v817
      %v921 = vunpack.c.l.b16 %v818
      %v922 = vunpack.c.h.b16 %v818
      %v923 = vunpack.c.l.b16 %v819
      %v924 = vunpack.c.h.b16 %v819
      %v925 = vunpack.c.l.b16 %v820
      %v926 = vunpack.c.h.b16 %v820
      %v927 = vunpack.c.l.b16 %v821
      %v928 = vunpack.c.h.b16 %v821
      %v929 = vunpack.c.l.b16 %v822
      %v930 = vunpack.c.h.b16 %v822
      %v931 = vpack.c.b16 %v869, %v867
      %v932 = vpack.c.b16 %v870, %v868
      %v933 = vpack.c.b16 %v873, %v871
      %v934 = vpack.c.b16 %v874, %v872
      %v935 = vpack.c.b16 %v877, %v875
      %v936 = vpack.c.b16 %v878, %v876
      %v937 = vpack.c.b16 %v881, %v879
      %v938 = vpack.c.b16 %v882, %v880
      %v939 = vpack.c.b16 %v885, %v883
      %v940 = vpack.c.b16 %v886, %v884
      %v941 = vpack.c.b16 %v889, %v887
      %v942 = vpack.c.b16 %v890, %v888
      %v943 = vpack.c.b16 %v893, %v891
      %v944 = vpack.c.b16 %v894, %v892
      %v945 = vpack.c.b16 %v897, %v895
      %v946 = vpack.c.b16 %v898, %v896
      %v947 = vpack.c.b16 %v901, %v899
      %v948 = vpack.c.b16 %v902, %v900
      %v949 = vpack.c.b16 %v905, %v903
      %v950 = vpack.c.b16 %v906, %v904
      %v951 = vpack.c.b16 %v909, %v907
      %v952 = vpack.c.b16 %v910, %v908
      %v953 = vpack.c.b16 %v913, %v911
      %v954 = vpack.c.b16 %v914, %v912
      %v955 = vpack.c.b16 %v917, %v915
      %v956 = vpack.c.b16 %v918, %v916
      %v957 = vpack.c.b16 %v921, %v919
      %v958 = vpack.c.b16 %v922, %v920
      %v959 = vpack.c.b16 %v925, %v923
      %v960 = vpack.c.b16 %v926, %v924
      %v961 = vpack.c.b16 %v929, %v927
      %v962 = vpack.c.b16 %v930, %v928
      %995 = vmatprep.subr.bf16.mxu0 %v946
      %996 = vmatpush1.bf16.msra.mxu0 %v945
      %997 = vmatprep.subr.bf16.mxu0 %v944
      %998 = vmatpush1.bf16.msra.mxu0 %v943
      %999 = vmatprep.subr.bf16.mxu0 %v942
      %1000 = vmatpush1.bf16.msra.mxu0 %v941
      %1001 = vmatprep.subr.bf16.mxu0 %v940
      %1002 = vmatpush1.bf16.msra.mxu0 %v939
      %1003 = vmatprep.subr.bf16.mxu0 %v938
      %1004 = vmatpush1.bf16.msra.mxu0 %v937
      %1005 = vmatprep.subr.bf16.mxu0 %v936
      %1006 = vmatpush1.bf16.msra.mxu0 %v935
      %1007 = vmatprep.subr.bf16.mxu0 %v934
      %1008 = vmatpush1.bf16.msra.mxu0 %v933
      %1009 = vmatprep.subr.bf16.mxu0 %v932
      %1010 = vmatpush1.bf16.msra.mxu0 %v931
      %1011 = vmatprep.subr.bf16.mxu0 %v962
      %1012 = vmatpush2.bf16.msra.mxu0 %v961
      %1013 = vmatprep.subr.bf16.mxu0 %v960
      %1014 = vmatpush2.bf16.msra.mxu0 %v959
      %1015 = vmatprep.subr.bf16.mxu0 %v958
      %1016 = vmatpush2.bf16.msra.mxu0 %v957
      %1017 = vmatprep.subr.bf16.mxu0 %v956
      %1018 = vmatpush2.bf16.msra.mxu0 %v955
      %1019 = vmatprep.subr.bf16.mxu0 %v954
      %1020 = vmatpush2.bf16.msra.mxu0 %v953
      %1021 = vmatprep.subr.bf16.mxu0 %v952
      %1022 = vmatpush2.bf16.msra.mxu0 %v951
      %1023 = vmatprep.subr.bf16.mxu0 %v950
      %1024 = vmatpush2.bf16.msra.mxu0 %v949
      %1025 = vmatprep.subr.bf16.mxu0 %v948
      %1026 = vmatpush2.bf16.msra.mxu0 %v947
      %1027 = vmatprep.mubr.bf16.mxu0 %v790
      %1028 = vmatmul.mubr.bf16.gmra.mxu0 %v789
      %v1029 = vpop.f32.mrf.mxu0
      %v1030 = vadd.f32 %v828, %v1029
      %v1031 = vpop.f32.mrf.mxu0
      %v1032 = vadd.f32 %v832, %v1031
      %v1033 = vpop.f32.mrf.mxu0
      %v1034 = vadd.f32 %v828, %v1033
      %v1035 = vpop.f32.mrf.mxu0
      %v1036 = vadd.f32 %v832, %v1035
      %1037 = vdwg.mxu0
      %v1038 = vmax.f32 %v1030, 0.0
      %v1039 = vmax.f32 %v1032, 0.0
      %v1040 = vmax.f32 %v1034, 0.0
      %v1041 = vmax.f32 %v1036, 0.0
      %v1042 = vpack.c.bf16 %v1040, %v1038
      %v1043 = vpack.c.bf16 %v1041, %v1039
      %v1044 = vld [vmem:[%s7] sm:$0xf]
      %v1045 = vld [vmem:[%s7 + $0x4] sm:$0xf]
      %v1046 = vld [vmem:[%s7 + $0x8] sm:$0xf]
      %v1047 = vld [vmem:[%s7 + $0xc] sm:$0xf]
      %v1048 = vld [vmem:[%s7 + $0x10] sm:$0xf]
      %v1049 = vld [vmem:[%s7 + $0x14] sm:$0xf]
      %v1050 = vld [vmem:[%s7 + $0x18] sm:$0xf]
      %v1051 = vld [vmem:[%s7 + $0x1c] sm:$0xf]
      %v1052 = vld [vmem:[%s7 + $0x20] sm:$0xf]
      %v1053 = vld [vmem:[%s7 + $0x24] sm:$0xf]
      %v1054 = vld [vmem:[%s7 + $0x28] sm:$0xf]
      %v1055 = vld [vmem:[%s7 + $0x2c] sm:$0xf]
      %v1056 = vld [vmem:[%s7 + $0x30] sm:$0xf]
      %v1057 = vld [vmem:[%s7 + $0x34] sm:$0xf]
      %v1058 = vld [vmem:[%s7 + $0x38] sm:$0xf]
      %v1059 = vld [vmem:[%s7 + $0x3c] sm:$0xf]
      %v1060 = vld [vmem:[%s7 + $0x40] sm:$0xf]
      %v1061 = vld [vmem:[%s7 + $0x44] sm:$0xf]
      %v1062 = vld [vmem:[%s7 + $0x48] sm:$0xf]
      %v1063 = vld [vmem:[%s7 + $0x4c] sm:$0xf]
      %v1064 = vld [vmem:[%s7 + $0x50] sm:$0xf]
      %v1065 = vld [vmem:[%s7 + $0x54] sm:$0xf]
      %v1066 = vld [vmem:[%s7 + $0x58] sm:$0xf]
      %v1067 = vld [vmem:[%s7 + $0x5c] sm:$0xf]
      %v1068 = vld [vmem:[%s7 + $0x60] sm:$0xf]
      %v1069 = vld [vmem:[%s7 + $0x64] sm:$0xf]
      %v1070 = vld [vmem:[%s7 + $0x68] sm:$0xf]
      %v1071 = vld [vmem:[%s7 + $0x6c] sm:$0xf]
      %v1072 = vld [vmem:[%s7 + $0x70] sm:$0xf]
      %v1073 = vld [vmem:[%s7 + $0x74] sm:$0xf]
      %v1074 = vld [vmem:[%s7 + $0x78] sm:$0xf]
      %v1075 = vld [vmem:[%s7 + $0x7c] sm:$0xf]
      %v1076 = vld [vmem:[%s8] sm:$0x1]
      %v1078 = vlaneseq
      %v1079 = vshrl.u32 %v1078, 7
      %v1080 = vsub.s32 0, %v1079
      %v1081 = vrot.slane %v1076, %v1080
      %v1115 = vunpack.c.l.b16 %v1044
      %v1116 = vunpack.c.l.b16 %v1045
      %v1117 = vunpack.c.l.b16 %v1046
      %v1118 = vunpack.c.l.b16 %v1047
      %v1119 = vunpack.c.l.b16 %v1048
      %v1120 = vunpack.c.l.b16 %v1049
      %v1121 = vunpack.c.l.b16 %v1050
      %v1122 = vunpack.c.l.b16 %v1051
      %v1123 = vunpack.c.l.b16 %v1052
      %v1124 = vunpack.c.l.b16 %v1053
      %v1125 = vunpack.c.l.b16 %v1054
      %v1126 = vunpack.c.l.b16 %v1055
      %v1127 = vunpack.c.l.b16 %v1056
      %v1128 = vunpack.c.l.b16 %v1057
      %v1129 = vunpack.c.l.b16 %v1058
      %v1130 = vunpack.c.l.b16 %v1059
      %v1131 = vunpack.c.l.b16 %v1060
      %v1132 = vunpack.c.l.b16 %v1061
      %v1133 = vunpack.c.l.b16 %v1062
      %v1134 = vunpack.c.l.b16 %v1063
      %v1135 = vunpack.c.l.b16 %v1064
      %v1136 = vunpack.c.l.b16 %v1065
      %v1137 = vunpack.c.l.b16 %v1066
      %v1138 = vunpack.c.l.b16 %v1067
      %v1139 = vunpack.c.l.b16 %v1068
      %v1140 = vunpack.c.l.b16 %v1069
      %v1141 = vunpack.c.l.b16 %v1070
      %v1142 = vunpack.c.l.b16 %v1071
      %v1143 = vunpack.c.l.b16 %v1072
      %v1144 = vunpack.c.l.b16 %v1073
      %v1145 = vunpack.c.l.b16 %v1074
      %v1146 = vunpack.c.l.b16 %v1075
      %v1147 = vpack.c.b16 %v1116, %v1115
      %v1148 = vpack.c.b16 %v1118, %v1117
      %v1149 = vpack.c.b16 %v1120, %v1119
      %v1150 = vpack.c.b16 %v1122, %v1121
      %v1151 = vpack.c.b16 %v1124, %v1123
      %v1152 = vpack.c.b16 %v1126, %v1125
      %v1153 = vpack.c.b16 %v1128, %v1127
      %v1154 = vpack.c.b16 %v1130, %v1129
      %v1155 = vpack.c.b16 %v1132, %v1131
      %v1156 = vpack.c.b16 %v1134, %v1133
      %v1157 = vpack.c.b16 %v1136, %v1135
      %v1158 = vpack.c.b16 %v1138, %v1137
      %v1159 = vpack.c.b16 %v1140, %v1139
      %v1160 = vpack.c.b16 %v1142, %v1141
      %v1161 = vpack.c.b16 %v1144, %v1143
      %v1162 = vpack.c.b16 %v1146, %v1145
      %1179 = vmatprep.subr.bf16.mxu0 0
      %1180 = vmatpush1.bf16.msra.mxu0 %v1154
      %1181 = vmatprep.subr.bf16.mxu0 0
      %1182 = vmatpush1.bf16.msra.mxu0 %v1153
      %1183 = vmatprep.subr.bf16.mxu0 0
      %1184 = vmatpush1.bf16.msra.mxu0 %v1152
      %1185 = vmatprep.subr.bf16.mxu0 0
      %1186 = vmatpush1.bf16.msra.mxu0 %v1151
      %1187 = vmatprep.subr.bf16.mxu0 0
      %1188 = vmatpush1.bf16.msra.mxu0 %v1150
      %1189 = vmatprep.subr.bf16.mxu0 0
      %1190 = vmatpush1.bf16.msra.mxu0 %v1149
      %1191 = vmatprep.subr.bf16.mxu0 0
      %1192 = vmatpush1.bf16.msra.mxu0 %v1148
      %1193 = vmatprep.subr.bf16.mxu0 0
      %1194 = vmatpush1.bf16.msra.mxu0 %v1147
      %1195 = vmatprep.subr.bf16.mxu0 0
      %1196 = vmatpush2.bf16.msra.mxu0 %v1162
      %1197 = vmatprep.subr.bf16.mxu0 0
      %1198 = vmatpush2.bf16.msra.mxu0 %v1161
      %1199 = vmatprep.subr.bf16.mxu0 0
      %1200 = vmatpush2.bf16.msra.mxu0 %v1160
      %1201 = vmatprep.subr.bf16.mxu0 0
      %1202 = vmatpush2.bf16.msra.mxu0 %v1159
      %1203 = vmatprep.subr.bf16.mxu0 0
      %1204 = vmatpush2.bf16.msra.mxu0 %v1158
      %1205 = vmatprep.subr.bf16.mxu0 0
      %1206 = vmatpush2.bf16.msra.mxu0 %v1157
      %1207 = vmatprep.subr.bf16.mxu0 0
      %1208 = vmatpush2.bf16.msra.mxu0 %v1156
      %1209 = vmatprep.subr.bf16.mxu0 0
      %1210 = vmatpush2.bf16.msra.mxu0 %v1155
      %1211 = vmatprep.mubr.bf16.mxu0 %v1043
      %1212 = vmatmul.mubr.bf16.gmra.mxu0 %v1042
      %v1213 = vpop.f32.mrf.mxu0
      %v1214 = vadd.f32 %v1081, %v1213
      %v1215 = vpop.f32.mrf.mxu0
      %v1216 = vpop.f32.mrf.mxu0
      %v1217 = vadd.f32 %v1081, %v1216
      %v1218 = vpop.f32.mrf.mxu0
      %1219 = vdwg.mxu0
      %1220 = vst [vmem:[%s370] sm:$0xff] %v1214
      %1221 = vst [vmem:[%s370 + $0x8] sm:$0xff] %v1217
      %s1222 = smul.u32 2, %s25
      %p1223 = scmp.lt.s32.totalorder %s24, 1
      %s1224 = scalar_select %p1223, %s24, 1
      %p1225 = scmp.lt.s32.totalorder %s1222, 1
      %s1226 = scalar_select %p1225, %s1222, 1
      %s1227 = smul.addr %s1224, 2
      %s1228 = sadd.s32 %s1226, %s1227
      %s1229 = smul.addr %s1228, 8
      %s1230 = scalar_lea.vmem %s9, %s1229
      // Predicated region
      $region57: #{_point_head_forward.1} parent=55 // pred_check
        %p1231 = pneg %p248
      $region58: #{_point_head_forward.1} parent=55 // pred_check_branch
        %1233 = sbr.rel (%p1231) target = $region60
      $region59: #{_point_head_forward.1} parent=55 // pred_region
        %s1234 = smul.u32 2, %s25
      $region60: #{_point_head_forward.1} parent=55 // pred_fallthru
        _
    $region56: #{_point_head_forward.1} parent=5 // pred_fallthru
      _
    %p1235 = scmp.le.s32.totalorder 2, %s15
    // Predicated region
    $region61: #{_point_head_forward.1} parent=5 // pred_check
      %p1236 = pneg %p1235
    $region62: #{_point_head_forward.1} parent=5 // pred_check_branch
      %1238 = sbr.rel (%p1236) target = $region64
    $region63: #{_point_head_forward.1} parent=5 // pred_region
      %s1239 = ssub.s32 %s15, 2
      // Predicated region
      $region65: #{_point_head_forward.1} parent=63 // pred_check
        %p1240 = pneg %p254
      $region66: #{_point_head_forward.1} parent=63 // pred_check_branch
        %1242 = sbr.rel (%p1240) target = $region68
      $region67: #{_point_head_forward.1} parent=63 // pred_region
        %s1243 = smul.u32 2, %s27
        %p1244 = scmp.lt.s32.totalorder %s26, 1
        %s1245 = scalar_select %p1244, %s26, 1
        %p1246 = scmp.lt.s32.totalorder %s1243, 1
        %s1247 = scalar_select %p1246, %s1243, 1
        %s1248 = smul.addr %s1245, 2
        %s1249 = sadd.s32 %s1247, %s1248
        %s1250 = smul.addr %s1249, 8
        %s1251 = scalar_lea.vmem %s9, %s1250
      $region68: #{_point_head_forward.1} parent=63 // pred_fallthru
        _
    $region64: #{_point_head_forward.1} parent=5 // pred_fallthru
      _
  $region6: #{_point_head_forward.1} parent=0 // loop_footer
    %s19 = sadd.s32 1, %s15
  $region7: #{_point_head_forward.1} parent=0 // loop_footer_branch
    %14 = sbr.rel target = $region3
  $region8: #{_point_head_forward.1} parent=0 // loop_exit
    _

</llo_original>
